<compile_context>
chip_gen: v6e
topology: v6e:2x2x1
jax: 0.10.0
libtpu: 0.0.40
codegen_flags: <defaults>
</compile_context>

<pallas_src>
import numpy as np
import jax
import jax.numpy as jnp
from jax.experimental import pallas as pl
from jax.experimental.pallas import tpu as pltpu


# ----------------------------------------------------------------------------
# Resize operators as matrices (host-side glue, plain numpy)
# ----------------------------------------------------------------------------
def _downsample_bilinear_aa_matrix(out_size: int, in_size: int) -> np.ndarray:
    """Antialiased bilinear resize operator (torchvision resize default)."""
    M = np.zeros((out_size, in_size), np.float32)
    scale = in_size / out_size
    support = scale if scale > 1.0 else 1.0          # interp_size/2 == 1 (bilinear)
    invscale = 1.0 / scale if scale > 1.0 else 1.0
    for j in range(out_size):
        center = scale * (j + 0.5)
        xmin = max(int(center - support + 0.5), 0)
        xmax = min(int(center + support + 0.5), in_size)
        ws = [max(0.0, 1.0 - abs((i - center + 0.5) * invscale))
              for i in range(xmin, xmax)]
        tot = sum(ws)
        for k, i in enumerate(range(xmin, xmax)):
            M[j, i] = ws[k] / tot
    return M


def _upsample_nearest_matrix(out_size: int, in_size: int) -> np.ndarray:
    """NEAREST upsample operator (PyTorch 'nearest' index convention)."""
    M = np.zeros((out_size, in_size), np.float32)
    scale = in_size / out_size
    for i in range(out_size):
        src = min(int(i * scale), in_size - 1)
        M[i, src] = 1.0
    return M


# ----------------------------------------------------------------------------
# Generation-aware sizing helpers
# ----------------------------------------------------------------------------
def _tpu_generation() -> str:
    try:
        kind = jax.devices()[0].device_kind.lower()
    except Exception:
        return "unknown"
    if "v5" in kind:
        return "v5"
    if "v6" in kind:
        return "v6"
    if "v7" in kind or "7x" in kind:
        return "v7"
    return "unknown"


def _vmem_capacity_bytes() -> int:
    try:
        cap = int(pltpu.get_tpu_info().vmem_capacity_bytes)
        if cap > 0:
            return cap
    except Exception:
        pass
    # v7x has 64 MiB per TensorCore; v5e/v6e have 128 MiB.
    return (64 << 20) if _tpu_generation() == "v7" else (128 << 20)


def _kron_max_pixels() -> int:
    # Kron-GEMM arithmetic intensity is HW/4 flops/byte; keep it below each
    # generation's compute/memory ridge so the extra FLOPs stay "free":
    #   v5e ridge ~240  -> HW <= ~960
    #   v6e ridge ~640+ -> HW <= ~2.5k
    #   v7x ridge ~310  -> HW <= ~1.2k
    return {"v5": 896, "v6": 2048, "v7": 1152}.get(_tpu_generation(), 1024)


def _vmem_limit(need_bytes: int) -> int:
    cap = _vmem_capacity_bytes() - (8 << 20)          # stay below physical VMEM
    return int(min(cap, max(32 << 20, need_bytes)))


def _choose_batch_tile(nc: int, per_image_vmem: int, fixed_vmem: int,
                       per_image_hbm: int, align: int) -> int:
    """Images per grid step.

    Bounded by (a) the generation's scoped-VMEM capacity, (b) a per-step
    input-slab budget (bigger on single-TC / 128 MiB parts), (c) the batch.
    Prefers a divisor of nc (no masked edge block) unless it is much smaller
    than the largest valid tile.  Only v7x keeps >=2 grid steps (2 TCs).
    """
    gen = _tpu_generation()
    scoped = _vmem_capacity_bytes() - (16 << 20)
    slab = (4 << 20) if gen == "v7" else (10 << 20)
    tb_max = min(nc,
                 max(1, (scoped - fixed_vmem) // max(per_image_vmem, 1)),
                 max(1, slab // max(per_image_hbm, 1)))

    def valid(t: int) -> bool:
        if t != nc and align > 1 and t % align != 0:
            return False
        if gen == "v7" and nc >= 2 * max(align, 1) and -(-nc // t) < 2:
            return False          # two-TC parts: keep both cores fed
        return True

    cands = [t for t in range(int(tb_max), 0, -1) if valid(t)]
    if not cands:
        return max(1, min(nc, int(tb_max)))
    best = cands[0]
    for t in cands:
        if nc % t == 0 and 2 * t >= best:
            return t              # largest "big enough" divisor of nc
    return best


# ----------------------------------------------------------------------------
# Kernel 1: small images — single lane-dense GEMM with the Kronecker operator
# ----------------------------------------------------------------------------
def _pixelate_kron_kernel(mt_ref, x_ref, o_ref):
    x = x_ref[...].astype(jnp.bfloat16)                        # (TB, H*W)
    y = jnp.dot(x, mt_ref[...], preferred_element_type=jnp.float32)
    o_ref[...] = y.astype(o_ref.dtype)


def _pixelate_call_small(x2: jax.Array, a_h: np.ndarray, a_w: np.ndarray,
                         out_dtype) -> jax.Array:
    nc, h, w = x2.shape
    hw = h * w
    mt = jnp.asarray(np.kron(a_h, a_w).T, jnp.bfloat16)        # (HW, HW)

    in_it = x2.dtype.itemsize
    out_it = np.dtype(out_dtype).itemsize
    # double-buffered in/out blocks + bf16 copy + f32 accumulator
    per_image_vmem = hw * (2 * in_it + 2 * out_it + 2 + 4)
    fixed_vmem = 2 * mt.size * 2 + (2 << 20)                   # 2 op buffers + margin

    tb = _choose_batch_tile(nc, per_image_vmem, fixed_vmem, hw * in_it, 8)
    if tb != nc and tb % 8 != 0:                               # (8,128) safety net
        tb = min(nc, 8)
    steps = -(-nc // tb)
    need = fixed_vmem + tb * per_image_vmem + (8 << 20)

    flops = 2 * nc * hw * hw
    bytes_acc = nc * hw * (in_it + out_it) + mt.size * 2

    out = pl.pallas_call(
        _pixelate_kron_kernel,
        out_shape=jax.ShapeDtypeStruct((nc, hw), out_dtype),
        grid_spec=pltpu.PrefetchScalarGridSpec(
            num_scalar_prefetch=0,
            grid=(steps,),
            in_specs=[
                pl.BlockSpec((hw, hw), lambda b: (0, 0)),      # constant: DMA'd once
                pl.BlockSpec((tb, hw), lambda b: (b, 0)),
            ],
            out_specs=pl.BlockSpec((tb, hw), lambda b: (b, 0)),
        ),
        compiler_params=pltpu.CompilerParams(
            dimension_semantics=("parallel",),
            vmem_limit_bytes=_vmem_limit(need),
        ),
        cost_estimate=pl.CostEstimate(
            flops=int(flops), transcendentals=0, bytes_accessed=int(bytes_acc)),
    )(mt, x2.reshape(nc, hw))
    return out.reshape(nc, h, w)


# ----------------------------------------------------------------------------
# Kernel 2: general images — dense separable operators, zero minor-dim
# transposes, lane-dense slabs when H*W is a multiple of 128.
# ----------------------------------------------------------------------------
def _make_separable_kernel(tb: int, h: int, w: int, flat: bool):
    def kernel(awt_ref, ah_ref, x_ref, o_ref):
        xb = x_ref[...].astype(jnp.bfloat16)
        xb = xb.reshape(tb * h, w)
        # 1) width stage: batch and height folded into the GEMM M dimension.
        t = jnp.dot(xb, awt_ref[...],
                    preferred_element_type=jnp.float32)        # (TB*H, W)
        t = t.reshape(tb, h, w).astype(jnp.bfloat16)
        # 2) height stage: batched (H,H) @ (H,W) per image.  Broadcasting the
        #    small A_h operator is cheaper than relayouting the (TB,H,W) data
        #    and keeps W on the lane dim end-to-end (no XLU transpose).
        ah_b = jnp.broadcast_to(ah_ref[...], (tb, h, h))
        out = jnp.einsum("bih,bhw->biw", ah_b, t,
                         preferred_element_type=jnp.float32)   # (TB, H, W)
        if flat:
            out = out.reshape(tb, h * w)
        o_ref[...] = out.astype(o_ref.dtype)
    return kernel


def _pixelate_call_general(x2: jax.Array, a_h: np.ndarray, a_w: np.ndarray,
                           out_dtype) -> jax.Array:
    nc, h, w = x2.shape
    hw = h * w
    awt = jnp.asarray(a_w.T, jnp.bfloat16)      # (W, W)
    ah = jnp.asarray(a_h, jnp.bfloat16)         # (H, H)

    in_it = x2.dtype.itemsize
    out_it = np.dtype(out_dtype).itemsize
    # 2x in + 2x out pipeline buffers + bf16/f32 temporaries + A_h broadcast
    per_image_vmem = hw * (2 * in_it + 2 * out_it + 2 + 4 + 2 + 4) + 2 * h * h
    fixed_vmem = 2 * (awt.size + ah.size) * 2 + (2 << 20)

    flat = (hw % 128) == 0                      # lane-dense DMA slabs
    tb = _choose_batch_tile(nc, per_image_vmem, fixed_vmem, hw * in_it,
                            8 if flat else 1)
    if flat and not (tb == nc or tb % 8 == 0):
        flat = False
        tb = _choose_batch_tile(nc, per_image_vmem, fixed_vmem, hw * in_it, 1)
    steps = -(-nc // tb)
    need = fixed_vmem + tb * per_image_vmem + (8 << 20)

    flops = 2 * nc * hw * (h + w)
    bytes_acc = nc * hw * (in_it + out_it) + (awt.size + ah.size) * 2

    kernel = _make_separable_kernel(tb, h, w, flat)
    cparams = pltpu.CompilerParams(
        dimension_semantics=("parallel",),
        vmem_limit_bytes=_vmem_limit(need),
    )
    cost = pl.CostEstimate(flops=int(flops), transcendentals=0,
                           bytes_accessed=int(bytes_acc))

    if flat:
        out = pl.pallas_call(
            kernel,
            out_shape=jax.ShapeDtypeStruct((nc, hw), out_dtype),
            grid_spec=pltpu.PrefetchScalarGridSpec(
                num_scalar_prefetch=0,
                grid=(steps,),
                in_specs=[
                    pl.BlockSpec((w, w), lambda b: (0, 0)),
                    pl.BlockSpec((h, h), lambda b: (0, 0)),
                    pl.BlockSpec((tb, hw), lambda b: (b, 0)),
                ],
                out_specs=pl.BlockSpec((tb, hw), lambda b: (b, 0)),
            ),
            compiler_params=cparams,
            cost_estimate=cost,
        )(awt, ah, x2.reshape(nc, hw))
        return out.reshape(nc, h, w)

    out = pl.pallas_call(
        kernel,
        out_shape=jax.ShapeDtypeStruct((nc, h, w), out_dtype),
        grid_spec=pltpu.PrefetchScalarGridSpec(
            num_scalar_prefetch=0,
            grid=(steps,),
            in_specs=[
                pl.BlockSpec((w, w), lambda b: (0, 0)),
                pl.BlockSpec((h, h), lambda b: (0, 0)),
                pl.BlockSpec((tb, h, w), lambda b: (b, 0, 0)),
            ],
            out_specs=pl.BlockSpec((tb, h, w), lambda b: (b, 0, 0)),
        ),
        compiler_params=cparams,
        cost_estimate=cost,
    )(awt, ah, x2)
    return out


# ----------------------------------------------------------------------------
# Public wrapper (matches the PyTorch module's forward)
# ----------------------------------------------------------------------------
def pixelate(img: jax.Array, block_size_avg: int, block_size: int | None = None):
    """Pixelate an NCHW image batch (eval mode unless block_size is given)."""
    if block_size is None:
        block_size = int(block_size_avg)       # .training == False path
    n, c, h, w = img.shape
    img_size = w                               # img.shape[-1] in the reference
    pixelated_size = img_size // block_size
    if pixelated_size < 1:
        raise ValueError("block_size must not exceed the image size")

    # Build the separable resize operators (host-side glue).
    d_h = _downsample_bilinear_aa_matrix(pixelated_size, h)
    u_h = _upsample_nearest_matrix(h, pixelated_size)
    d_w = _downsample_bilinear_aa_matrix(pixelated_size, w)
    u_w = _upsample_nearest_matrix(w, pixelated_size)
    a_h = u_h @ d_h                            # (H, H)
    a_w = u_w @ d_w                            # (W, W)

    x2 = img.reshape(n * c, h, w)
    if h * w <= _kron_max_pixels():
        out = _pixelate_call_small(x2, a_h, a_w, img.dtype)
    else:
        out = _pixelate_call_general(x2, a_h, a_w, img.dtype)
    return out.reshape(n, c, h, w)


# ----------------------------------------------------------------------------
# Pure-numpy reference for self-checking
# ----------------------------------------------------------------------------
def _pixelate_reference(img, block_size: int) -> np.ndarray:
    x = np.asarray(img, np.float32)
    _, _, h, w = x.shape
    p = w // block_size
    a_h = _upsample_nearest_matrix(h, p) @ _downsample_bilinear_aa_matrix(p, h)
    a_w = _upsample_nearest_matrix(w, p) @ _downsample_bilinear_aa_matrix(p, w)
    return np.einsum("ij,ncjk,lk->ncil", a_h, x, a_w)


if __name__ == "__main__":
    key = jax.random.PRNGKey(0)

    # Primary shape from the module spec: Pixelate(block_size_avg=4), eval mode.
    img = jax.random.uniform(key, (2, 4, 16, 16), dtype=jnp.float32)
    out = pixelate(img, block_size_avg=4)
    jax.block_until_ready(out)
    assert out.shape == img.shape and out.dtype == img.dtype
    ref = _pixelate_reference(img, 4)
    assert float(np.max(np.abs(np.asarray(out) - ref))) < 5e-2  # bf16 MXU tolerance

    # Also exercise the general (dense-separable, batched) path on a larger image.
    img2 = jax.random.uniform(jax.random.PRNGKey(1), (1, 2, 64, 64),
                              dtype=jnp.float32)
    out2 = pixelate(img2, block_size_avg=8)
    jax.block_until_ready(out2)
    assert out2.shape == img2.shape and out2.dtype == img2.dtype
    ref2 = _pixelate_reference(img2, 8)
    assert float(np.max(np.abs(np.asarray(out2) - ref2))) < 5e-2

    print("KERNEL_OK")
</pallas_src>

<mosaic_0001>
module attributes {stable_mosaic.version = 11 : i64} {
  func.func @_pixelate_kron_kernel(%arg0: i32, %arg1: memref<256x256xbf16, #tpu.memory_space<vmem>>, %arg2: memref<8x256xf32, #tpu.memory_space<vmem>>, %arg3: memref<8x256xf32, #tpu.memory_space<vmem>>) attributes {dimension_semantics = [#tpu.dimension_semantics<parallel>], iteration_bounds = array<i64: 1>, scalar_prefetch = 0 : i64, scratch_operands = 0 : i64, tpu.core_type = #tpu.core_type<tc>, window_params = [{pipeline_mode = #tpu.pipeline_mode<synchronous>, transform_indices = @transform_0, window_bounds = array<i64: 256, 256>}, {transform_indices = @transform_1, window_bounds = array<i64: 8, 256>}, {transform_indices = @transform_2, window_bounds = array<i64: 8, 256>}]} {
    %c0 = arith.constant 0 : index
    %c0_0 = arith.constant 0 : index
    %0 = vector.load %arg2[%c0, %c0_0] : memref<8x256xf32, #tpu.memory_space<vmem>>, vector<8x256xf32>
    %1 = arith.truncf %0 : vector<8x256xf32> to vector<8x256xbf16>
    %c0_1 = arith.constant 0 : index
    %c0_2 = arith.constant 0 : index
    %2 = vector.load %arg1[%c0_1, %c0_2] : memref<256x256xbf16, #tpu.memory_space<vmem>>, vector<256x256xbf16>
    %cst = arith.constant dense<0.000000e+00> : vector<8x256xf32>
    %3 = tpu.matmul %1, %2, %cst {dimension_numbers = #tpu.dot_dimension_numbers<[1], [0], [0], [1], [0, 0, 1, 1], [], []>} : vector<8x256xbf16>, vector<256x256xbf16>, vector<8x256xf32> -> vector<8x256xf32>
    %c0_3 = arith.constant 0 : index
    %c0_4 = arith.constant 0 : index
    %4 = vector.load %arg3[%c0_3, %c0_4] : memref<8x256xf32, #tpu.memory_space<vmem>>, vector<8x256xf32>
    tpu.vector_store %arg3[%c0_3, %c0_4], %3 {strides = array<i32>} : memref<8x256xf32, #tpu.memory_space<vmem>>, vector<8x256xf32>,
    return
  }
  func.func @transform_0(%arg0: i32) -> (i32, i32) {
    %c0_i32 = arith.constant 0 : i32
    %c0_i32_0 = arith.constant 0 : i32
    %c0_i32_1 = arith.constant 0 : i32
    return %c0_i32, %c0_i32_0 : i32, i32
  }
  func.func @transform_1(%arg0: i32) -> (i32, i32) {
    %c0_i32 = arith.constant 0 : i32
    %c0_i32_0 = arith.constant 0 : i32
    return %arg0, %c0_i32 : i32, i32
  }
  func.func @transform_2(%arg0: i32) -> (i32, i32) {
    %c0_i32 = arith.constant 0 : i32
    %c0_i32_0 = arith.constant 0 : i32
    return %arg0, %c0_i32 : i32, i32
  }
}

</mosaic_0001>

<llo_original>
// kernel: tpu_custom_call.1
$region0: #{tpu_custom_call.1}
  #allocation0 [shape = 'u32[]', space=smem, size = 0x4, offset = 0x4, fixed_abs, tag = 'smem constant byte address 0x4 - core index']
  #allocation1 [shape = 'u32[144,128]{1,0:T(1,128)}', space=vmem, size = 0x12000, scoped, tag = 'internal scratch']
  %s0 = inlined_call_operand.hbm [shape: bf16[256,256], index: 0, kind: input, shape index: {}]
  %s1 = inlined_call_operand.hbm [shape: f32[8,256], index: 1, kind: input, shape index: {}]
  %s2 = inlined_call_operand.hbm [shape: f32[8,256], index: 2, kind: output, shape index: {}]
  %s3 = sld [smem:[#allocation0]]
  $region26: #{tpu_custom_call.1} parent=0
    _
  %s5 = ssub.s32 1, %s3
  %s6 = scalar_select 0, %s5, %s3
  $region1: #{tpu_custom_call.1} parent=0
    #allocation2 [shape = 'u8[131072]{0}', space=vmem, size = 0x20000, scoped, tag = 'input window, operand 0, single buffered']
    #allocation3 [shape = 's32[1]{0}', space=sflag, size = 0x4, scoped, tag = 'scoped memory for tpu_custom_call.1']
    #allocation4 [shape = 's32[1]{0}', space=sflag, size = 0x4, scoped, tag = 'scoped memory for tpu_custom_call.1']
    #allocation5 [shape = 'u8[8192]{0}', space=vmem, size = 0x2000, scoped, tag = 'input window, operand 1, single buffered']
    #allocation6 [shape = 's32[1]{0}', space=sflag, size = 0x4, scoped, tag = 'scoped memory for tpu_custom_call.1']
    #allocation7 [shape = 'u8[8192]{0}', space=vmem, size = 0x2000, scoped, tag = 'output window, operand 0, single buffered']
    %7 = vsyncpa [#allocation3], 0
    %8 = vsyncpa [#allocation6], 0
    %9 = vsyncpa [#allocation4], 0
    // Predicated region
    $region2: #{tpu_custom_call.1} parent=1 // pred_check
      _
    $region3: #{tpu_custom_call.1} parent=1 // pred_check_branch
      %11 = sbr.rel (0) target = $region5
    $region4: #{tpu_custom_call.1} parent=1 // pred_region
      %s13 = ssub.s32 4096, 4096
      %14 = vsyncadd [#allocation3], %s13
      %s15 = sshll.u32 [#allocation2], 4
      %s16 = int_to_ptr.vmem [resolvable:$true] %s15
      %21 = dma.hbm_to_vmem [thread:$0]  %s0, 4096, %s16, [#allocation3], 128, 128, 8
    $region5: #{tpu_custom_call.1} parent=1 // pred_fallthru
      _
    // Predicated region
    $region6: #{tpu_custom_call.1} parent=1 // pred_check
      _
    $region7: #{tpu_custom_call.1} parent=1 // pred_check_branch
      %23 = sbr.rel (0) target = $region9
    $region8: #{tpu_custom_call.1} parent=1 // pred_region
      %s25 = ssub.s32 256, 256
      %26 = vsyncadd [#allocation6], %s25
      %s28 = sshll.u32 [#allocation5], 4
      %s29 = int_to_ptr.vmem [resolvable:$true] %s28
      %31 = dma.hbm_to_vmem [thread:$0]  %s1, 256, %s29, [#allocation6]
    $region9: #{tpu_custom_call.1} parent=1 // pred_fallthru
      _
    // Predicated region
    $region10: #{tpu_custom_call.1} parent=1 // pred_check
      _
    $region11: #{tpu_custom_call.1} parent=1 // pred_check_branch
      %33 = sbr.rel (0) target = $region13
    $region12: #{tpu_custom_call.1} parent=1 // pred_region
      %34 = dma.done [#allocation3], 4096
    $region13: #{tpu_custom_call.1} parent=1 // pred_fallthru
      _
    // Predicated region
    $region14: #{tpu_custom_call.1} parent=1 // pred_check
      _
    $region15: #{tpu_custom_call.1} parent=1 // pred_check_branch
      %36 = sbr.rel (0) target = $region17
    $region16: #{tpu_custom_call.1} parent=1 // pred_region
      %37 = dma.done [#allocation6], 256
    $region17: #{tpu_custom_call.1} parent=1 // pred_fallthru
      _
    %v38 = vld [vmem:[#allocation5] sm:$0xff]
    %v39 = vld [vmem:[#allocation5 + $0x8] sm:$0xff]
    %v40 = vpack.c.bf16 %v38, %v38
    %v41 = vpack.c.bf16 %v39, %v39
    %v42 = vld [vmem:[#allocation2] sm:$0xff]
    %v43 = vld [vmem:[#allocation2 + $0x8] sm:$0xff]
    %v44 = vld [vmem:[#allocation2 + $0x10] sm:$0xff]
    %v45 = vld [vmem:[#allocation2 + $0x18] sm:$0xff]
    %v46 = vld [vmem:[#allocation2 + $0x20] sm:$0xff]
    %v47 = vld [vmem:[#allocation2 + $0x28] sm:$0xff]
    %v48 = vld [vmem:[#allocation2 + $0x30] sm:$0xff]
    %v49 = vld [vmem:[#allocation2 + $0x38] sm:$0xff]
    %v50 = vld [vmem:[#allocation2 + $0x40] sm:$0xff]
    %v51 = vld [vmem:[#allocation2 + $0x48] sm:$0xff]
    %v52 = vld [vmem:[#allocation2 + $0x50] sm:$0xff]
    %v53 = vld [vmem:[#allocation2 + $0x58] sm:$0xff]
    %v54 = vld [vmem:[#allocation2 + $0x60] sm:$0xff]
    %v55 = vld [vmem:[#allocation2 + $0x68] sm:$0xff]
    %v56 = vld [vmem:[#allocation2 + $0x70] sm:$0xff]
    %v57 = vld [vmem:[#allocation2 + $0x78] sm:$0xff]
    %v58 = vld [vmem:[#allocation2 + $0x80] sm:$0xff]
    %v59 = vld [vmem:[#allocation2 + $0x88] sm:$0xff]
    %v60 = vld [vmem:[#allocation2 + $0x90] sm:$0xff]
    %v61 = vld [vmem:[#allocation2 + $0x98] sm:$0xff]
    %v62 = vld [vmem:[#allocation2 + $0xa0] sm:$0xff]
    %v63 = vld [vmem:[#allocation2 + $0xa8] sm:$0xff]
    %v64 = vld [vmem:[#allocation2 + $0xb0] sm:$0xff]
    %v65 = vld [vmem:[#allocation2 + $0xb8] sm:$0xff]
    %v66 = vld [vmem:[#allocation2 + $0xc0] sm:$0xff]
    %v67 = vld [vmem:[#allocation2 + $0xc8] sm:$0xff]
    %v68 = vld [vmem:[#allocation2 + $0xd0] sm:$0xff]
    %v69 = vld [vmem:[#allocation2 + $0xd8] sm:$0xff]
    %v70 = vld [vmem:[#allocation2 + $0xe0] sm:$0xff]
    %v71 = vld [vmem:[#allocation2 + $0xe8] sm:$0xff]
    %v72 = vld [vmem:[#allocation2 + $0xf0] sm:$0xff]
    %v73 = vld [vmem:[#allocation2 + $0xf8] sm:$0xff]
    %v106 = vunpack.c.l.b16 %v42
    %v107 = vunpack.c.h.b16 %v42
    %v108 = vunpack.c.l.b16 %v43
    %v109 = vunpack.c.h.b16 %v43
    %v110 = vunpack.c.l.b16 %v44
    %v111 = vunpack.c.h.b16 %v44
    %v112 = vunpack.c.l.b16 %v45
    %v113 = vunpack.c.h.b16 %v45
    %v114 = vunpack.c.l.b16 %v46
    %v115 = vunpack.c.h.b16 %v46
    %v116 = vunpack.c.l.b16 %v47
    %v117 = vunpack.c.h.b16 %v47
    %v118 = vunpack.c.l.b16 %v48
    %v119 = vunpack.c.h.b16 %v48
    %v120 = vunpack.c.l.b16 %v49
    %v121 = vunpack.c.h.b16 %v49
    %v122 = vunpack.c.l.b16 %v50
    %v123 = vunpack.c.h.b16 %v50
    %v124 = vunpack.c.l.b16 %v51
    %v125 = vunpack.c.h.b16 %v51
    %v126 = vunpack.c.l.b16 %v52
    %v127 = vunpack.c.h.b16 %v52
    %v128 = vunpack.c.l.b16 %v53
    %v129 = vunpack.c.h.b16 %v53
    %v130 = vunpack.c.l.b16 %v54
    %v131 = vunpack.c.h.b16 %v54
    %v132 = vunpack.c.l.b16 %v55
    %v133 = vunpack.c.h.b16 %v55
    %v134 = vunpack.c.l.b16 %v56
    %v135 = vunpack.c.h.b16 %v56
    %v136 = vunpack.c.l.b16 %v57
    %v137 = vunpack.c.h.b16 %v57
    %v138 = vunpack.c.l.b16 %v58
    %v139 = vunpack.c.h.b16 %v58
    %v140 = vunpack.c.l.b16 %v59
    %v141 = vunpack.c.h.b16 %v59
    %v142 = vunpack.c.l.b16 %v60
    %v143 = vunpack.c.h.b16 %v60
    %v144 = vunpack.c.l.b16 %v61
    %v145 = vunpack.c.h.b16 %v61
    %v146 = vunpack.c.l.b16 %v62
    %v147 = vunpack.c.h.b16 %v62
    %v148 = vunpack.c.l.b16 %v63
    %v149 = vunpack.c.h.b16 %v63
    %v150 = vunpack.c.l.b16 %v64
    %v151 = vunpack.c.h.b16 %v64
    %v152 = vunpack.c.l.b16 %v65
    %v153 = vunpack.c.h.b16 %v65
    %v154 = vunpack.c.l.b16 %v66
    %v155 = vunpack.c.h.b16 %v66
    %v156 = vunpack.c.l.b16 %v67
    %v157 = vunpack.c.h.b16 %v67
    %v158 = vunpack.c.l.b16 %v68
    %v159 = vunpack.c.h.b16 %v68
    %v160 = vunpack.c.l.b16 %v69
    %v161 = vunpack.c.h.b16 %v69
    %v162 = vunpack.c.l.b16 %v70
    %v163 = vunpack.c.h.b16 %v70
    %v164 = vunpack.c.l.b16 %v71
    %v165 = vunpack.c.h.b16 %v71
    %v166 = vunpack.c.l.b16 %v72
    %v167 = vunpack.c.h.b16 %v72
    %v168 = vunpack.c.l.b16 %v73
    %v169 = vunpack.c.h.b16 %v73
    %v170 = vpack.c.b16 %v108, %v106
    %v171 = vpack.c.b16 %v109, %v107
    %v172 = vpack.c.b16 %v112, %v110
    %v173 = vpack.c.b16 %v113, %v111
    %v174 = vpack.c.b16 %v116, %v114
    %v175 = vpack.c.b16 %v117, %v115
    %v176 = vpack.c.b16 %v120, %v118
    %v177 = vpack.c.b16 %v121, %v119
    %v178 = vpack.c.b16 %v124, %v122
    %v179 = vpack.c.b16 %v125, %v123
    %v180 = vpack.c.b16 %v128, %v126
    %v181 = vpack.c.b16 %v129, %v127
    %v182 = vpack.c.b16 %v132, %v130
    %v183 = vpack.c.b16 %v133, %v131
    %v184 = vpack.c.b16 %v136, %v134
    %v185 = vpack.c.b16 %v137, %v135
    %v186 = vpack.c.b16 %v140, %v138
    %v187 = vpack.c.b16 %v141, %v139
    %v188 = vpack.c.b16 %v144, %v142
    %v189 = vpack.c.b16 %v145, %v143
    %v190 = vpack.c.b16 %v148, %v146
    %v191 = vpack.c.b16 %v149, %v147
    %v192 = vpack.c.b16 %v152, %v150
    %v193 = vpack.c.b16 %v153, %v151
    %v194 = vpack.c.b16 %v156, %v154
    %v195 = vpack.c.b16 %v157, %v155
    %v196 = vpack.c.b16 %v160, %v158
    %v197 = vpack.c.b16 %v161, %v159
    %v198 = vpack.c.b16 %v164, %v162
    %v199 = vpack.c.b16 %v165, %v163
    %v200 = vpack.c.b16 %v168, %v166
    %v201 = vpack.c.b16 %v169, %v167
    %234 = vmatprep.subr.bf16.mxu0 %v185
    %235 = vmatpush1.bf16.msra.mxu0 %v184
    %236 = vmatprep.subr.bf16.mxu0 %v183
    %237 = vmatpush1.bf16.msra.mxu0 %v182
    %238 = vmatprep.subr.bf16.mxu0 %v181
    %239 = vmatpush1.bf16.msra.mxu0 %v180
    %240 = vmatprep.subr.bf16.mxu0 %v179
    %241 = vmatpush1.bf16.msra.mxu0 %v178
    %242 = vmatprep.subr.bf16.mxu0 %v177
    %243 = vmatpush1.bf16.msra.mxu0 %v176
    %244 = vmatprep.subr.bf16.mxu0 %v175
    %245 = vmatpush1.bf16.msra.mxu0 %v174
    %246 = vmatprep.subr.bf16.mxu0 %v173
    %247 = vmatpush1.bf16.msra.mxu0 %v172
    %248 = vmatprep.subr.bf16.mxu0 %v171
    %249 = vmatpush1.bf16.msra.mxu0 %v170
    %250 = vmatprep.subr.bf16.mxu0 %v201
    %251 = vmatpush2.bf16.msra.mxu0 %v200
    %252 = vmatprep.subr.bf16.mxu0 %v199
    %253 = vmatpush2.bf16.msra.mxu0 %v198
    %254 = vmatprep.subr.bf16.mxu0 %v197
    %255 = vmatpush2.bf16.msra.mxu0 %v196
    %256 = vmatprep.subr.bf16.mxu0 %v195
    %257 = vmatpush2.bf16.msra.mxu0 %v194
    %258 = vmatprep.subr.bf16.mxu0 %v193
    %259 = vmatpush2.bf16.msra.mxu0 %v192
    %260 = vmatprep.subr.bf16.mxu0 %v191
    %261 = vmatpush2.bf16.msra.mxu0 %v190
    %262 = vmatprep.subr.bf16.mxu0 %v189
    %263 = vmatpush2.bf16.msra.mxu0 %v188
    %264 = vmatprep.subr.bf16.mxu0 %v187
    %265 = vmatpush2.bf16.msra.mxu0 %v186
    %266 = vmatprep.mubr.bf16.mxu0 %v41
    %267 = vmatmul.mubr.bf16.gmra.mxu0 %v40
    %v268 = vpop.f32.mrf.mxu0
    %v269 = vadd.f32 0.0, %v268
    %v270 = vpop.f32.mrf.mxu0
    %v271 = vadd.f32 0.0, %v270
    %v272 = vpop.f32.mrf.mxu0
    %v273 = vpop.f32.mrf.mxu0
    %274 = vdwg.mxu0
    %275 = vst [vmem:[#allocation7] sm:$0xff] %v269
    %276 = vst [vmem:[#allocation7 + $0x8] sm:$0xff] %v271
    // Predicated region
    $region18: #{tpu_custom_call.1} parent=1 // pred_check
      _
    $region19: #{tpu_custom_call.1} parent=1 // pred_check_branch
      %278 = sbr.rel (0) target = $region21
    $region20: #{tpu_custom_call.1} parent=1 // pred_region
      %s280 = ssub.s32 256, 256
      %281 = vsyncadd [#allocation4], %s280
      %s283 = sshll.u32 [#allocation7], 4
      %s284 = int_to_ptr.vmem [resolvable:$true] %s283
      %286 = dma.vmem_to_hbm [thread:$0]  %s284, 256, %s2, [#allocation4]
    $region21: #{tpu_custom_call.1} parent=1 // pred_fallthru
      _
    // Predicated region
    $region22: #{tpu_custom_call.1} parent=1 // pred_check
      _
    $region23: #{tpu_custom_call.1} parent=1 // pred_check_branch
      %288 = sbr.rel (0) target = $region25
    $region24: #{tpu_custom_call.1} parent=1 // pred_region
      %289 = dma.done [#allocation4], 256
    $region25: #{tpu_custom_call.1} parent=1 // pred_fallthru
      _
    %290 = vsyncpa [#allocation3], 1
    %291 = vsyncpa [#allocation6], 1
    %292 = vsyncpa [#allocation4], 1

</llo_original>
